<compile_context>
chip_gen: v5e
topology: v5e:2x2
jax: 0.10.0
libtpu: 0.0.40
codegen_flags: <defaults>
</compile_context>

<pallas_src>
import jax
import jax.numpy as jnp
from jax.experimental import pallas as pl
from jax.experimental.pallas import tpu as pltpu  # noqa: F401  (kept for TPU-specific tuning hooks)


def linear_kernel(x_ref, w_ref, b_ref, o_ref):
    # x_ref: (M, K), w_ref: (K, N), b_ref: (1, N), o_ref: (M, N)
    acc = jnp.dot(x_ref[...], w_ref[...], preferred_element_type=jnp.float32)
    o_ref[...] = (acc + b_ref[...]).astype(o_ref.dtype)


def linear_pallas(x2d, w_t, bias2d):
    """x2d: (M, K) f32, w_t: (K, N) f32 (weight already transposed once at init),
    bias2d: (1, N) f32. Returns (M, N) f32. Single kernel invocation, no grid."""
    M, K = x2d.shape
    K2, N = w_t.shape
    assert K == K2
    assert bias2d.shape == (1, N)

    bytes_accessed = 4 * (M * K + K * N + N + M * N)
    return pl.pallas_call(
        linear_kernel,
        out_shape=jax.ShapeDtypeStruct((M, N), x2d.dtype),
        in_specs=[
            pl.BlockSpec((M, K), lambda: (0, 0)),
            pl.BlockSpec((K, N), lambda: (0, 0)),
            pl.BlockSpec((1, N), lambda: (0, 0)),
        ],
        out_specs=pl.BlockSpec((M, N), lambda: (0, 0)),
        cost_estimate=pl.CostEstimate(
            flops=2 * M * K * N,
            transcendentals=0,
            bytes_accessed=bytes_accessed,
        ),
    )(x2d, w_t, bias2d)


def forward(x225, w_t, bias2d):
    """x225: (1, 384, 4, 64); w_t: (256, 256) = weight.T (pre-transposed);
    bias2d: (1, 256).  Implements x225.view(1,384,256) @ W.T + b."""
    B, S = x225.shape[0], x225.shape[1]
    K = x225.shape[2] * x225.shape[3]
    x2d = x225.reshape(B * S, K)          # the .view() -> pure layout reshape
    y2d = linear_pallas(x2d, w_t, bias2d)
    return y2d.reshape(B, S, w_t.shape[1])


if __name__ == "__main__":
    key = jax.random.PRNGKey(0)
    k_x, k_w, k_b = jax.random.split(key, 3)

    # Shapes implied by the module's forward
    x225 = jax.random.normal(k_x, (1, 384, 4, 64), dtype=jnp.float32)

    # Deterministic parameter init (Linear(256, 256)): weight (out, in), bias (out,)
    in_features, out_features = 256, 256
    bound = 1.0 / (in_features ** 0.5)
    weight = jax.random.uniform(
        k_w, (out_features, in_features), minval=-bound, maxval=bound,
        dtype=jnp.float32)
    bias = jax.random.uniform(
        k_b, (out_features,), minval=-bound, maxval=bound, dtype=jnp.float32)

    # One-time parameter prep (outside the hot path / jitted forward):
    w_t = jnp.asarray(weight.T)           # (in, out) = (K, N)
    bias2d = bias.reshape(1, out_features)

    fwd = jax.jit(forward)
    out = fwd(x225, w_t, bias2d)
    out = jax.block_until_ready(out)

    # Sanity check against pure-JAX reference
    ref = x225.reshape(1, 384, 256) @ weight.T + bias
    assert out.shape == (1, 384, 256)
    assert jnp.allclose(out, ref, atol=1e-4, rtol=1e-4)

    print("KERNEL_OK")
</pallas_src>

<mosaic_0001>
module attributes {stable_mosaic.version = 11 : i64} {
  func.func @linear_kernel(%arg0: memref<384x256xf32, #tpu.memory_space<vmem>>, %arg1: memref<256x256xf32, #tpu.memory_space<vmem>>, %arg2: memref<1x256xf32, #tpu.memory_space<vmem>>, %arg3: memref<384x256xf32, #tpu.memory_space<vmem>>) attributes {dimension_semantics = [], scalar_prefetch = 0 : i64, scratch_operands = 0 : i64, tpu.core_type = #tpu.core_type<tc>} {
    %c0 = arith.constant 0 : index
    %c0_0 = arith.constant 0 : index
    %0 = vector.load %arg0[%c0, %c0_0] : memref<384x256xf32, #tpu.memory_space<vmem>>, vector<384x256xf32>
    %c0_1 = arith.constant 0 : index
    %c0_2 = arith.constant 0 : index
    %1 = vector.load %arg1[%c0_1, %c0_2] : memref<256x256xf32, #tpu.memory_space<vmem>>, vector<256x256xf32>
    %cst = arith.constant dense<0.000000e+00> : vector<384x256xf32>
    %2 = tpu.matmul %0, %1, %cst {dimension_numbers = #tpu.dot_dimension_numbers<[1], [0], [0], [1], [0, 0, 1, 1], [], []>} : vector<384x256xf32>, vector<256x256xf32>, vector<384x256xf32> -> vector<384x256xf32>
    %c0_3 = arith.constant 0 : index
    %c0_4 = arith.constant 0 : index
    %3 = vector.load %arg2[%c0_3, %c0_4] : memref<1x256xf32, #tpu.memory_space<vmem>>, vector<1x256xf32>
    %4 = vector.broadcast %3 : vector<1x256xf32> to vector<384x256xf32>
    %5 = arith.addf %2, %4 : vector<384x256xf32>
    %c0_5 = arith.constant 0 : index
    %c0_6 = arith.constant 0 : index
    %6 = vector.load %arg3[%c0_5, %c0_6] : memref<384x256xf32, #tpu.memory_space<vmem>>, vector<384x256xf32>
    tpu.vector_store %arg3[%c0_5, %c0_6], %5 {strides = array<i32>} : memref<384x256xf32, #tpu.memory_space<vmem>>, vector<384x256xf32>,
    return
  }
}

</mosaic_0001>

<llo_original>
// kernel: forward.1
$region0: #{forward.1}
  #allocation0 [shape = 'u32[]', space=smem, size = 0x4, offset = 0x4, fixed_abs, tag = 'smem constant byte address 0x4 - core index']
  #allocation1 [shape = 'u32[72,128]{1,0:T(1,128)}', space=vmem, size = 0x9000, scoped, tag = 'internal scratch']
  %s0 = inlined_call_operand.vmem [shape: f32[384,256], index: 0, kind: input, shape index: {}]
  %s1 = inlined_call_operand.vmem [shape: f32[256,256], index: 1, kind: input, shape index: {}]
  %s2 = inlined_call_operand.vmem [shape: f32[1,256], index: 2, kind: input, shape index: {}]
  %s3 = inlined_call_operand.hbm [shape: f32[384,256], index: 3, kind: output, shape index: {}]
  %s4 = sld [smem:[#allocation0]]
  $region22: #{forward.1} parent=0
    _
  %s6 = ssub.s32 1, %s4
  %s7 = scalar_select 0, %s6, %s4
  $region1: #{forward.1} parent=0
    #allocation2 [shape = 'u8[393216]{0}', space=vmem, size = 0x60000, scoped, tag = 'output window, operand 0, single buffered']
    #allocation3 [shape = 's32[1]{0}', space=sflag, size = 0x4, scoped, tag = 'scoped memory for forward.1']
    %8 = vsyncpa [#allocation3], 0
    // Predicated region
    $region2: #{forward.1} parent=1 // pred_check
      _
    $region3: #{forward.1} parent=1 // pred_check_branch
      %10 = sbr.rel (0) target = $region5
    $region4: #{forward.1} parent=1 // pred_region
      _
    $region5: #{forward.1} parent=1 // pred_fallthru
      _
    // Predicated region
    $region6: #{forward.1} parent=1 // pred_check
      _
    $region7: #{forward.1} parent=1 // pred_check_branch
      %12 = sbr.rel (0) target = $region9
    $region8: #{forward.1} parent=1 // pred_region
      _
    $region9: #{forward.1} parent=1 // pred_fallthru
      _
    // Predicated region
    $region10: #{forward.1} parent=1 // pred_check
      _
    $region11: #{forward.1} parent=1 // pred_check_branch
      %14 = sbr.rel (0) target = $region13
    $region12: #{forward.1} parent=1 // pred_region
      _
    $region13: #{forward.1} parent=1 // pred_fallthru
      _
    %v15 = vld [vmem:[%s0] sm:$0xff]
    %v16 = vld [vmem:[%s0 + $0x8] sm:$0xff]
    %v17 = vld [vmem:[%s0 + $0x10] sm:$0xff]
    %v18 = vld [vmem:[%s0 + $0x18] sm:$0xff]
    %v19 = vld [vmem:[%s0 + $0x20] sm:$0xff]
    %v20 = vld [vmem:[%s0 + $0x28] sm:$0xff]
    %v21 = vld [vmem:[%s0 + $0x30] sm:$0xff]
    %v22 = vld [vmem:[%s0 + $0x38] sm:$0xff]
    %v23 = vld [vmem:[%s0 + $0x40] sm:$0xff]
    %v24 = vld [vmem:[%s0 + $0x48] sm:$0xff]
    %v25 = vld [vmem:[%s0 + $0x50] sm:$0xff]
    %v26 = vld [vmem:[%s0 + $0x58] sm:$0xff]
    %v27 = vld [vmem:[%s0 + $0x60] sm:$0xff]
    %v28 = vld [vmem:[%s0 + $0x68] sm:$0xff]
    %v29 = vld [vmem:[%s0 + $0x70] sm:$0xff]
    %v30 = vld [vmem:[%s0 + $0x78] sm:$0xff]
    %v31 = vld [vmem:[%s0 + $0x80] sm:$0xff]
    %v32 = vld [vmem:[%s0 + $0x88] sm:$0xff]
    %v33 = vld [vmem:[%s0 + $0x90] sm:$0xff]
    %v34 = vld [vmem:[%s0 + $0x98] sm:$0xff]
    %v35 = vld [vmem:[%s0 + $0xa0] sm:$0xff]
    %v36 = vld [vmem:[%s0 + $0xa8] sm:$0xff]
    %v37 = vld [vmem:[%s0 + $0xb0] sm:$0xff]
    %v38 = vld [vmem:[%s0 + $0xb8] sm:$0xff]
    %v39 = vld [vmem:[%s0 + $0xc0] sm:$0xff]
    %v40 = vld [vmem:[%s0 + $0xc8] sm:$0xff]
    %v41 = vld [vmem:[%s0 + $0xd0] sm:$0xff]
    %v42 = vld [vmem:[%s0 + $0xd8] sm:$0xff]
    %v43 = vld [vmem:[%s0 + $0xe0] sm:$0xff]
    %v44 = vld [vmem:[%s0 + $0xe8] sm:$0xff]
    %v45 = vld [vmem:[%s0 + $0xf0] sm:$0xff]
    %v46 = vld [vmem:[%s0 + $0xf8] sm:$0xff]
    %v47 = vld [vmem:[%s0 + $0x100] sm:$0xff]
    %v48 = vld [vmem:[%s0 + $0x108] sm:$0xff]
    %v49 = vld [vmem:[%s0 + $0x110] sm:$0xff]
    %v50 = vld [vmem:[%s0 + $0x118] sm:$0xff]
    %v51 = vld [vmem:[%s0 + $0x120] sm:$0xff]
    %v52 = vld [vmem:[%s0 + $0x128] sm:$0xff]
    %v53 = vld [vmem:[%s0 + $0x130] sm:$0xff]
    %v54 = vld [vmem:[%s0 + $0x138] sm:$0xff]
    %v55 = vld [vmem:[%s0 + $0x140] sm:$0xff]
    %v56 = vld [vmem:[%s0 + $0x148] sm:$0xff]
    %v57 = vld [vmem:[%s0 + $0x150] sm:$0xff]
    %v58 = vld [vmem:[%s0 + $0x158] sm:$0xff]
    %v59 = vld [vmem:[%s0 + $0x160] sm:$0xff]
    %v60 = vld [vmem:[%s0 + $0x168] sm:$0xff]
    %v61 = vld [vmem:[%s0 + $0x170] sm:$0xff]
    %v62 = vld [vmem:[%s0 + $0x178] sm:$0xff]
    %v63 = vld [vmem:[%s0 + $0x180] sm:$0xff]
    %v64 = vld [vmem:[%s0 + $0x188] sm:$0xff]
    %v65 = vld [vmem:[%s0 + $0x190] sm:$0xff]
    %v66 = vld [vmem:[%s0 + $0x198] sm:$0xff]
    %v67 = vld [vmem:[%s0 + $0x1a0] sm:$0xff]
    %v68 = vld [vmem:[%s0 + $0x1a8] sm:$0xff]
    %v69 = vld [vmem:[%s0 + $0x1b0] sm:$0xff]
    %v70 = vld [vmem:[%s0 + $0x1b8] sm:$0xff]
    %v71 = vld [vmem:[%s0 + $0x1c0] sm:$0xff]
    %v72 = vld [vmem:[%s0 + $0x1c8] sm:$0xff]
    %v73 = vld [vmem:[%s0 + $0x1d0] sm:$0xff]
    %v74 = vld [vmem:[%s0 + $0x1d8] sm:$0xff]
    %v75 = vld [vmem:[%s0 + $0x1e0] sm:$0xff]
    %v76 = vld [vmem:[%s0 + $0x1e8] sm:$0xff]
    %v77 = vld [vmem:[%s0 + $0x1f0] sm:$0xff]
    %v78 = vld [vmem:[%s0 + $0x1f8] sm:$0xff]
    %v79 = vld [vmem:[%s0 + $0x200] sm:$0xff]
    %v80 = vld [vmem:[%s0 + $0x208] sm:$0xff]
    %v81 = vld [vmem:[%s0 + $0x210] sm:$0xff]
    %v82 = vld [vmem:[%s0 + $0x218] sm:$0xff]
    %v83 = vld [vmem:[%s0 + $0x220] sm:$0xff]
    %v84 = vld [vmem:[%s0 + $0x228] sm:$0xff]
    %v85 = vld [vmem:[%s0 + $0x230] sm:$0xff]
    %v86 = vld [vmem:[%s0 + $0x238] sm:$0xff]
    %v87 = vld [vmem:[%s0 + $0x240] sm:$0xff]
    %v88 = vld [vmem:[%s0 + $0x248] sm:$0xff]
    %v89 = vld [vmem:[%s0 + $0x250] sm:$0xff]
    %v90 = vld [vmem:[%s0 + $0x258] sm:$0xff]
    %v91 = vld [vmem:[%s0 + $0x260] sm:$0xff]
    %v92 = vld [vmem:[%s0 + $0x268] sm:$0xff]
    %v93 = vld [vmem:[%s0 + $0x270] sm:$0xff]
    %v94 = vld [vmem:[%s0 + $0x278] sm:$0xff]
    %v95 = vld [vmem:[%s0 + $0x280] sm:$0xff]
    %v96 = vld [vmem:[%s0 + $0x288] sm:$0xff]
    %v97 = vld [vmem:[%s0 + $0x290] sm:$0xff]
    %v98 = vld [vmem:[%s0 + $0x298] sm:$0xff]
    %v99 = vld [vmem:[%s0 + $0x2a0] sm:$0xff]
    %v100 = vld [vmem:[%s0 + $0x2a8] sm:$0xff]
    %v101 = vld [vmem:[%s0 + $0x2b0] sm:$0xff]
    %v102 = vld [vmem:[%s0 + $0x2b8] sm:$0xff]
    %v103 = vld [vmem:[%s0 + $0x2c0] sm:$0xff]
    %v104 = vld [vmem:[%s0 + $0x2c8] sm:$0xff]
    %v105 = vld [vmem:[%s0 + $0x2d0] sm:$0xff]
    %v106 = vld [vmem:[%s0 + $0x2d8] sm:$0xff]
    %v107 = vld [vmem:[%s0 + $0x2e0] sm:$0xff]
    %v108 = vld [vmem:[%s0 + $0x2e8] sm:$0xff]
    %v109 = vld [vmem:[%s0 + $0x2f0] sm:$0xff]
    %v110 = vld [vmem:[%s0 + $0x2f8] sm:$0xff]
    %v111 = vld [vmem:[%s1] sm:$0xff]
    %v112 = vld [vmem:[%s1 + $0x8] sm:$0xff]
    %v113 = vld [vmem:[%s1 + $0x10] sm:$0xff]
    %v114 = vld [vmem:[%s1 + $0x18] sm:$0xff]
    %v115 = vld [vmem:[%s1 + $0x20] sm:$0xff]
    %v116 = vld [vmem:[%s1 + $0x28] sm:$0xff]
    %v117 = vld [vmem:[%s1 + $0x30] sm:$0xff]
    %v118 = vld [vmem:[%s1 + $0x38] sm:$0xff]
    %v119 = vld [vmem:[%s1 + $0x40] sm:$0xff]
    %v120 = vld [vmem:[%s1 + $0x48] sm:$0xff]
    %v121 = vld [vmem:[%s1 + $0x50] sm:$0xff]
    %v122 = vld [vmem:[%s1 + $0x58] sm:$0xff]
    %v123 = vld [vmem:[%s1 + $0x60] sm:$0xff]
    %v124 = vld [vmem:[%s1 + $0x68] sm:$0xff]
    %v125 = vld [vmem:[%s1 + $0x70] sm:$0xff]
    %v126 = vld [vmem:[%s1 + $0x78] sm:$0xff]
    %v127 = vld [vmem:[%s1 + $0x80] sm:$0xff]
    %v128 = vld [vmem:[%s1 + $0x88] sm:$0xff]
    %v129 = vld [vmem:[%s1 + $0x90] sm:$0xff]
    %v130 = vld [vmem:[%s1 + $0x98] sm:$0xff]
    %v131 = vld [vmem:[%s1 + $0xa0] sm:$0xff]
    %v132 = vld [vmem:[%s1 + $0xa8] sm:$0xff]
    %v133 = vld [vmem:[%s1 + $0xb0] sm:$0xff]
    %v134 = vld [vmem:[%s1 + $0xb8] sm:$0xff]
    %v135 = vld [vmem:[%s1 + $0xc0] sm:$0xff]
    %v136 = vld [vmem:[%s1 + $0xc8] sm:$0xff]
    %v137 = vld [vmem:[%s1 + $0xd0] sm:$0xff]
    %v138 = vld [vmem:[%s1 + $0xd8] sm:$0xff]
    %v139 = vld [vmem:[%s1 + $0xe0] sm:$0xff]
    %v140 = vld [vmem:[%s1 + $0xe8] sm:$0xff]
    %v141 = vld [vmem:[%s1 + $0xf0] sm:$0xff]
    %v142 = vld [vmem:[%s1 + $0xf8] sm:$0xff]
    %v143 = vld [vmem:[%s1 + $0x100] sm:$0xff]
    %v144 = vld [vmem:[%s1 + $0x108] sm:$0xff]
    %v145 = vld [vmem:[%s1 + $0x110] sm:$0xff]
    %v146 = vld [vmem:[%s1 + $0x118] sm:$0xff]
    %v147 = vld [vmem:[%s1 + $0x120] sm:$0xff]
    %v148 = vld [vmem:[%s1 + $0x128] sm:$0xff]
    %v149 = vld [vmem:[%s1 + $0x130] sm:$0xff]
    %v150 = vld [vmem:[%s1 + $0x138] sm:$0xff]
    %v151 = vld [vmem:[%s1 + $0x140] sm:$0xff]
    %v152 = vld [vmem:[%s1 + $0x148] sm:$0xff]
    %v153 = vld [vmem:[%s1 + $0x150] sm:$0xff]
    %v154 = vld [vmem:[%s1 + $0x158] sm:$0xff]
    %v155 = vld [vmem:[%s1 + $0x160] sm:$0xff]
    %v156 = vld [vmem:[%s1 + $0x168] sm:$0xff]
    %v157 = vld [vmem:[%s1 + $0x170] sm:$0xff]
    %v158 = vld [vmem:[%s1 + $0x178] sm:$0xff]
    %v159 = vld [vmem:[%s1 + $0x180] sm:$0xff]
    %v160 = vld [vmem:[%s1 + $0x188] sm:$0xff]
    %v161 = vld [vmem:[%s1 + $0x190] sm:$0xff]
    %v162 = vld [vmem:[%s1 + $0x198] sm:$0xff]
    %v163 = vld [vmem:[%s1 + $0x1a0] sm:$0xff]
    %v164 = vld [vmem:[%s1 + $0x1a8] sm:$0xff]
    %v165 = vld [vmem:[%s1 + $0x1b0] sm:$0xff]
    %v166 = vld [vmem:[%s1 + $0x1b8] sm:$0xff]
    %v167 = vld [vmem:[%s1 + $0x1c0] sm:$0xff]
    %v168 = vld [vmem:[%s1 + $0x1c8] sm:$0xff]
    %v169 = vld [vmem:[%s1 + $0x1d0] sm:$0xff]
    %v170 = vld [vmem:[%s1 + $0x1d8] sm:$0xff]
    %v171 = vld [vmem:[%s1 + $0x1e0] sm:$0xff]
    %v172 = vld [vmem:[%s1 + $0x1e8] sm:$0xff]
    %v173 = vld [vmem:[%s1 + $0x1f0] sm:$0xff]
    %v174 = vld [vmem:[%s1 + $0x1f8] sm:$0xff]
    %v175 = vld [vmem:[%s2] sm:$0x3]
    %v177 = vperm.slane %v175, 0
    %v178 = vperm.slane %v175, 1
    %181 = vmatpush.msra.mxu0 %v141
    %182 = vmatpush.msra.mxu0 %v139
    %183 = vmatpush.msra.mxu0 %v137
    %184 = vmatpush.msra.mxu0 %v135
    %185 = vmatpush.msra.mxu0 %v133
    %186 = vmatpush.msra.mxu0 %v131
    %187 = vmatpush.msra.mxu0 %v129
    %188 = vmatpush.msra.mxu0 %v127
    %189 = vmatpush.msra.mxu0 %v125
    %190 = vmatpush.msra.mxu0 %v123
    %191 = vmatpush.msra.mxu0 %v121
    %192 = vmatpush.msra.mxu0 %v119
    %193 = vmatpush.msra.mxu0 %v117
    %194 = vmatpush.msra.mxu0 %v115
    %195 = vmatpush.msra.mxu0 %v113
    %196 = vmatpush.msra.mxu0 %v111
    %197 = vmatmul.f32.gmra.mxu0 %v15
    %v198 = vpop.f32.mrf.mxu0
    %v199 = vadd.f32 %v177, %v198
    %200 = vmatmul.f32.gmra.mxu0 %v17
    %v201 = vpop.f32.mrf.mxu0
    %v202 = vadd.f32 %v177, %v201
    %203 = vmatmul.f32.gmra.mxu0 %v19
    %v204 = vpop.f32.mrf.mxu0
    %v205 = vadd.f32 %v177, %v204
    %206 = vmatmul.f32.gmra.mxu0 %v21
    %v207 = vpop.f32.mrf.mxu0
    %v208 = vadd.f32 %v177, %v207
    %209 = vmatmul.f32.gmra.mxu0 %v23
    %v210 = vpop.f32.mrf.mxu0
    %v211 = vadd.f32 %v177, %v210
    %212 = vmatmul.f32.gmra.mxu0 %v25
    %v213 = vpop.f32.mrf.mxu0
    %v214 = vadd.f32 %v177, %v213
    %215 = vmatmul.f32.gmra.mxu0 %v27
    %v216 = vpop.f32.mrf.mxu0
    %v217 = vadd.f32 %v177, %v216
    %218 = vmatmul.f32.gmra.mxu0 %v29
    %v219 = vpop.f32.mrf.mxu0
    %v220 = vadd.f32 %v177, %v219
    %221 = vmatmul.f32.gmra.mxu0 %v31
    %v222 = vpop.f32.mrf.mxu0
    %v223 = vadd.f32 %v177, %v222
    %224 = vmatmul.f32.gmra.mxu0 %v33
    %v225 = vpop.f32.mrf.mxu0
    %v226 = vadd.f32 %v177, %v225
    %227 = vmatmul.f32.gmra.mxu0 %v35
    %v228 = vpop.f32.mrf.mxu0
    %v229 = vadd.f32 %v177, %v228
    %230 = vmatmul.f32.gmra.mxu0 %v37
    %v231 = vpop.f32.mrf.mxu0
    %v232 = vadd.f32 %v177, %v231
    %233 = vmatmul.f32.gmra.mxu0 %v39
    %v234 = vpop.f32.mrf.mxu0
    %v235 = vadd.f32 %v177, %v234
    %236 = vmatmul.f32.gmra.mxu0 %v41
    %v237 = vpop.f32.mrf.mxu0
    %v238 = vadd.f32 %v177, %v237
    %239 = vmatmul.f32.gmra.mxu0 %v43
    %v240 = vpop.f32.mrf.mxu0
    %v241 = vadd.f32 %v177, %v240
    %242 = vmatmul.f32.gmra.mxu0 %v45
    %v243 = vpop.f32.mrf.mxu0
    %v244 = vadd.f32 %v177, %v243
    %245 = vmatmul.f32.gmra.mxu0 %v47
    %v246 = vpop.f32.mrf.mxu0
    %v247 = vadd.f32 %v177, %v246
    %248 = vmatmul.f32.gmra.mxu0 %v49
    %v249 = vpop.f32.mrf.mxu0
    %v250 = vadd.f32 %v177, %v249
    %251 = vmatmul.f32.gmra.mxu0 %v51
    %v252 = vpop.f32.mrf.mxu0
    %v253 = vadd.f32 %v177, %v252
    %254 = vmatmul.f32.gmra.mxu0 %v53
    %v255 = vpop.f32.mrf.mxu0
    %v256 = vadd.f32 %v177, %v255
    %257 = vmatmul.f32.gmra.mxu0 %v55
    %v258 = vpop.f32.mrf.mxu0
    %v259 = vadd.f32 %v177, %v258
    %260 = vmatmul.f32.gmra.mxu0 %v57
    %v261 = vpop.f32.mrf.mxu0
    %v262 = vadd.f32 %v177, %v261
    %263 = vmatmul.f32.gmra.mxu0 %v59
    %v264 = vpop.f32.mrf.mxu0
    %v265 = vadd.f32 %v177, %v264
    %266 = vmatmul.f32.gmra.mxu0 %v61
    %v267 = vpop.f32.mrf.mxu0
    %v268 = vadd.f32 %v177, %v267
    %269 = vmatmul.f32.gmra.mxu0 %v63
    %v270 = vpop.f32.mrf.mxu0
    %v271 = vadd.f32 %v177, %v270
    %272 = vmatmul.f32.gmra.mxu0 %v65
    %v273 = vpop.f32.mrf.mxu0
    %v274 = vadd.f32 %v177, %v273
    %275 = vmatmul.f32.gmra.mxu0 %v67
    %v276 = vpop.f32.mrf.mxu0
    %v277 = vadd.f32 %v177, %v276
    %278 = vmatmul.f32.gmra.mxu0 %v69
    %v279 = vpop.f32.mrf.mxu0
    %v280 = vadd.f32 %v177, %v279
    %281 = vmatmul.f32.gmra.mxu0 %v71
    %v282 = vpop.f32.mrf.mxu0
    %v283 = vadd.f32 %v177, %v282
    %284 = vmatmul.f32.gmra.mxu0 %v73
    %v285 = vpop.f32.mrf.mxu0
    %v286 = vadd.f32 %v177, %v285
    %287 = vmatmul.f32.gmra.mxu0 %v75
    %v288 = vpop.f32.mrf.mxu0
    %v289 = vadd.f32 %v177, %v288
    %290 = vmatmul.f32.gmra.mxu0 %v77
    %v291 = vpop.f32.mrf.mxu0
    %v292 = vadd.f32 %v177, %v291
    %293 = vmatmul.f32.gmra.mxu0 %v79
    %v294 = vpop.f32.mrf.mxu0
    %v295 = vadd.f32 %v177, %v294
    %296 = vmatmul.f32.gmra.mxu0 %v81
    %v297 = vpop.f32.mrf.mxu0
    %v298 = vadd.f32 %v177, %v297
    %299 = vmatmul.f32.gmra.mxu0 %v83
    %v300 = vpop.f32.mrf.mxu0
    %v301 = vadd.f32 %v177, %v300
    %302 = vmatmul.f32.gmra.mxu0 %v85
    %v303 = vpop.f32.mrf.mxu0
    %v304 = vadd.f32 %v177, %v303
    %305 = vmatmul.f32.gmra.mxu0 %v87
    %v306 = vpop.f32.mrf.mxu0
    %v307 = vadd.f32 %v177, %v306
    %308 = vmatmul.f32.gmra.mxu0 %v89
    %v309 = vpop.f32.mrf.mxu0
    %v310 = vadd.f32 %v177, %v309
    %311 = vmatmul.f32.gmra.mxu0 %v91
    %v312 = vpop.f32.mrf.mxu0
    %v313 = vadd.f32 %v177, %v312
    %314 = vmatmul.f32.gmra.mxu0 %v93
    %v315 = vpop.f32.mrf.mxu0
    %v316 = vadd.f32 %v177, %v315
    %317 = vmatmul.f32.gmra.mxu0 %v95
    %v318 = vpop.f32.mrf.mxu0
    %v319 = vadd.f32 %v177, %v318
    %320 = vmatmul.f32.gmra.mxu0 %v97
    %v321 = vpop.f32.mrf.mxu0
    %v322 = vadd.f32 %v177, %v321
    %323 = vmatmul.f32.gmra.mxu0 %v99
    %v324 = vpop.f32.mrf.mxu0
    %v325 = vadd.f32 %v177, %v324
    %326 = vmatmul.f32.gmra.mxu0 %v101
    %v327 = vpop.f32.mrf.mxu0
    %v328 = vadd.f32 %v177, %v327
    %329 = vmatmul.f32.gmra.mxu0 %v103
    %v330 = vpop.f32.mrf.mxu0
    %v331 = vadd.f32 %v177, %v330
    %332 = vmatmul.f32.gmra.mxu0 %v105
    %v333 = vpop.f32.mrf.mxu0
    %v334 = vadd.f32 %v177, %v333
    %335 = vmatmul.f32.gmra.mxu0 %v107
    %v336 = vpop.f32.mrf.mxu0
    %v337 = vadd.f32 %v177, %v336
    %338 = vmatmul.f32.gmra.mxu0 %v109
    %v339 = vpop.f32.mrf.mxu0
    %v340 = vadd.f32 %v177, %v339
    %341 = vdwg.mxu0
    %342 = vmatpush.msra.mxu0 %v173
    %343 = vmatpush.msra.mxu0 %v171
    %344 = vmatpush.msra.mxu0 %v169
    %345 = vmatpush.msra.mxu0 %v167
    %346 = vmatpush.msra.mxu0 %v165
    %347 = vmatpush.msra.mxu0 %v163
    %348 = vmatpush.msra.mxu0 %v161
    %349 = vmatpush.msra.mxu0 %v159
    %350 = vmatpush.msra.mxu0 %v157
    %351 = vmatpush.msra.mxu0 %v155
    %352 = vmatpush.msra.mxu0 %v153
    %353 = vmatpush.msra.mxu0 %v151
    %354 = vmatpush.msra.mxu0 %v149
    %355 = vmatpush.msra.mxu0 %v147
    %356 = vmatpush.msra.mxu0 %v145
    %357 = vmatpush.msra.mxu0 %v143
    %358 = vmatmul.f32.gmra.mxu0 %v16
    %v359 = vpop.f32.mrf.mxu0
    %v360 = vadd.f32 %v199, %v359
    %361 = vmatmul.f32.gmra.mxu0 %v18
    %v362 = vpop.f32.mrf.mxu0
    %v363 = vadd.f32 %v202, %v362
    %364 = vmatmul.f32.gmra.mxu0 %v20
    %v365 = vpop.f32.mrf.mxu0
    %v366 = vadd.f32 %v205, %v365
    %367 = vmatmul.f32.gmra.mxu0 %v22
    %v368 = vpop.f32.mrf.mxu0
    %v369 = vadd.f32 %v208, %v368
    %370 = vmatmul.f32.gmra.mxu0 %v24
    %v371 = vpop.f32.mrf.mxu0
    %v372 = vadd.f32 %v211, %v371
    %373 = vmatmul.f32.gmra.mxu0 %v26
    %v374 = vpop.f32.mrf.mxu0
    %v375 = vadd.f32 %v214, %v374
    %376 = vmatmul.f32.gmra.mxu0 %v28
    %v377 = vpop.f32.mrf.mxu0
    %v378 = vadd.f32 %v217, %v377
    %379 = vmatmul.f32.gmra.mxu0 %v30
    %v380 = vpop.f32.mrf.mxu0
    %v381 = vadd.f32 %v220, %v380
    %382 = vmatmul.f32.gmra.mxu0 %v32
    %v383 = vpop.f32.mrf.mxu0
    %v384 = vadd.f32 %v223, %v383
    %385 = vmatmul.f32.gmra.mxu0 %v34
    %v386 = vpop.f32.mrf.mxu0
    %v387 = vadd.f32 %v226, %v386
    %388 = vmatmul.f32.gmra.mxu0 %v36
    %v389 = vpop.f32.mrf.mxu0
    %v390 = vadd.f32 %v229, %v389
    %391 = vmatmul.f32.gmra.mxu0 %v38
    %v392 = vpop.f32.mrf.mxu0
    %v393 = vadd.f32 %v232, %v392
    %394 = vmatmul.f32.gmra.mxu0 %v40
    %v395 = vpop.f32.mrf.mxu0
    %v396 = vadd.f32 %v235, %v395
    %397 = vmatmul.f32.gmra.mxu0 %v42
    %v398 = vpop.f32.mrf.mxu0
    %v399 = vadd.f32 %v238, %v398
    %400 = vmatmul.f32.gmra.mxu0 %v44
    %v401 = vpop.f32.mrf.mxu0
    %v402 = vadd.f32 %v241, %v401
    %403 = vmatmul.f32.gmra.mxu0 %v46
    %v404 = vpop.f32.mrf.mxu0
    %v405 = vadd.f32 %v244, %v404
    %406 = vmatmul.f32.gmra.mxu0 %v48
    %v407 = vpop.f32.mrf.mxu0
    %v408 = vadd.f32 %v247, %v407
    %409 = vmatmul.f32.gmra.mxu0 %v50
    %v410 = vpop.f32.mrf.mxu0
    %v411 = vadd.f32 %v250, %v410
    %412 = vmatmul.f32.gmra.mxu0 %v52
    %v413 = vpop.f32.mrf.mxu0
    %v414 = vadd.f32 %v253, %v413
    %415 = vmatmul.f32.gmra.mxu0 %v54
    %v416 = vpop.f32.mrf.mxu0
    %v417 = vadd.f32 %v256, %v416
    %418 = vmatmul.f32.gmra.mxu0 %v56
    %v419 = vpop.f32.mrf.mxu0
    %v420 = vadd.f32 %v259, %v419
    %421 = vmatmul.f32.gmra.mxu0 %v58
    %v422 = vpop.f32.mrf.mxu0
    %v423 = vadd.f32 %v262, %v422
    %424 = vmatmul.f32.gmra.mxu0 %v60
    %v425 = vpop.f32.mrf.mxu0
    %v426 = vadd.f32 %v265, %v425
    %427 = vmatmul.f32.gmra.mxu0 %v62
    %v428 = vpop.f32.mrf.mxu0
    %v429 = vadd.f32 %v268, %v428
    %430 = vmatmul.f32.gmra.mxu0 %v64
    %v431 = vpop.f32.mrf.mxu0
    %v432 = vadd.f32 %v271, %v431
    %433 = vmatmul.f32.gmra.mxu0 %v66
    %v434 = vpop.f32.mrf.mxu0
    %v435 = vadd.f32 %v274, %v434
    %436 = vmatmul.f32.gmra.mxu0 %v68
    %v437 = vpop.f32.mrf.mxu0
    %v438 = vadd.f32 %v277, %v437
    %439 = vmatmul.f32.gmra.mxu0 %v70
    %v440 = vpop.f32.mrf.mxu0
    %v441 = vadd.f32 %v280, %v440
    %442 = vmatmul.f32.gmra.mxu0 %v72
    %v443 = vpop.f32.mrf.mxu0
    %v444 = vadd.f32 %v283, %v443
    %445 = vmatmul.f32.gmra.mxu0 %v74
    %v446 = vpop.f32.mrf.mxu0
    %v447 = vadd.f32 %v286, %v446
    %448 = vmatmul.f32.gmra.mxu0 %v76
    %v449 = vpop.f32.mrf.mxu0
    %v450 = vadd.f32 %v289, %v449
    %451 = vmatmul.f32.gmra.mxu0 %v78
    %v452 = vpop.f32.mrf.mxu0
    %v453 = vadd.f32 %v292, %v452
    %454 = vmatmul.f32.gmra.mxu0 %v80
    %v455 = vpop.f32.mrf.mxu0
    %v456 = vadd.f32 %v295, %v455
    %457 = vmatmul.f32.gmra.mxu0 %v82
    %v458 = vpop.f32.mrf.mxu0
    %v459 = vadd.f32 %v298, %v458
    %460 = vmatmul.f32.gmra.mxu0 %v84
    %v461 = vpop.f32.mrf.mxu0
    %v462 = vadd.f32 %v301, %v461
    %463 = vmatmul.f32.gmra.mxu0 %v86
    %v464 = vpop.f32.mrf.mxu0
    %v465 = vadd.f32 %v304, %v464
    %466 = vmatmul.f32.gmra.mxu0 %v88
    %v467 = vpop.f32.mrf.mxu0
    %v468 = vadd.f32 %v307, %v467
    %469 = vmatmul.f32.gmra.mxu0 %v90
    %v470 = vpop.f32.mrf.mxu0
    %v471 = vadd.f32 %v310, %v470
    %472 = vmatmul.f32.gmra.mxu0 %v92
    %v473 = vpop.f32.mrf.mxu0
    %v474 = vadd.f32 %v313, %v473
    %475 = vmatmul.f32.gmra.mxu0 %v94
    %v476 = vpop.f32.mrf.mxu0
    %v477 = vadd.f32 %v316, %v476
    %478 = vmatmul.f32.gmra.mxu0 %v96
    %v479 = vpop.f32.mrf.mxu0
    %v480 = vadd.f32 %v319, %v479
    %481 = vmatmul.f32.gmra.mxu0 %v98
    %v482 = vpop.f32.mrf.mxu0
    %v483 = vadd.f32 %v322, %v482
    %484 = vmatmul.f32.gmra.mxu0 %v100
    %v485 = vpop.f32.mrf.mxu0
    %v486 = vadd.f32 %v325, %v485
    %487 = vmatmul.f32.gmra.mxu0 %v102
    %v488 = vpop.f32.mrf.mxu0
    %v489 = vadd.f32 %v328, %v488
    %490 = vmatmul.f32.gmra.mxu0 %v104
    %v491 = vpop.f32.mrf.mxu0
    %v492 = vadd.f32 %v331, %v491
    %493 = vmatmul.f32.gmra.mxu0 %v106
    %v494 = vpop.f32.mrf.mxu0
    %v495 = vadd.f32 %v334, %v494
    %496 = vmatmul.f32.gmra.mxu0 %v108
    %v497 = vpop.f32.mrf.mxu0
    %v498 = vadd.f32 %v337, %v497
    %499 = vmatmul.f32.gmra.mxu0 %v110
    %v500 = vpop.f32.mrf.mxu0
    %v501 = vadd.f32 %v340, %v500
    %502 = vdwg.mxu0
    %503 = vmatpush.msra.mxu0 %v142
    %504 = vmatpush.msra.mxu0 %v140
    %505 = vmatpush.msra.mxu0 %v138
    %506 = vmatpush.msra.mxu0 %v136
    %507 = vmatpush.msra.mxu0 %v134
    %508 = vmatpush.msra.mxu0 %v132
    %509 = vmatpush.msra.mxu0 %v130
    %510 = vmatpush.msra.mxu0 %v128
    %511 = vmatpush.msra.mxu0 %v126
    %512 = vmatpush.msra.mxu0 %v124
    %513 = vmatpush.msra.mxu0 %v122
    %514 = vmatpush.msra.mxu0 %v120
    %515 = vmatpush.msra.mxu0 %v118
    %516 = vmatpush.msra.mxu0 %v116
    %517 = vmatpush.msra.mxu0 %v114
    %518 = vmatpush.msra.mxu0 %v112
    %519 = vmatmul.f32.gmra.mxu0 %v15
    %v520 = vpop.f32.mrf.mxu0
    %v521 = vadd.f32 %v178, %v520
    %522 = vmatmul.f32.gmra.mxu0 %v17
    %v523 = vpop.f32.mrf.mxu0
    %v524 = vadd.f32 %v178, %v523
    %525 = vmatmul.f32.gmra.mxu0 %v19
    %v526 = vpop.f32.mrf.mxu0
    %v527 = vadd.f32 %v178, %v526
    %528 = vmatmul.f32.gmra.mxu0 %v21
    %v529 = vpop.f32.mrf.mxu0
    %v530 = vadd.f32 %v178, %v529
    %531 = vmatmul.f32.gmra.mxu0 %v23
    %v532 = vpop.f32.mrf.mxu0
    %v533 = vadd.f32 %v178, %v532
    %534 = vmatmul.f32.gmra.mxu0 %v25
    %v535 = vpop.f32.mrf.mxu0
    %v536 = vadd.f32 %v178, %v535
    %537 = vmatmul.f32.gmra.mxu0 %v27
    %v538 = vpop.f32.mrf.mxu0
    %v539 = vadd.f32 %v178, %v538
    %540 = vmatmul.f32.gmra.mxu0 %v29
    %v541 = vpop.f32.mrf.mxu0
    %v542 = vadd.f32 %v178, %v541
    %543 = vmatmul.f32.gmra.mxu0 %v31
    %v544 = vpop.f32.mrf.mxu0
    %v545 = vadd.f32 %v178, %v544
    %546 = vmatmul.f32.gmra.mxu0 %v33
    %v547 = vpop.f32.mrf.mxu0
    %v548 = vadd.f32 %v178, %v547
    %549 = vmatmul.f32.gmra.mxu0 %v35
    %v550 = vpop.f32.mrf.mxu0
    %v551 = vadd.f32 %v178, %v550
    %552 = vmatmul.f32.gmra.mxu0 %v37
    %v553 = vpop.f32.mrf.mxu0
    %v554 = vadd.f32 %v178, %v553
    %555 = vmatmul.f32.gmra.mxu0 %v39
    %v556 = vpop.f32.mrf.mxu0
    %v557 = vadd.f32 %v178, %v556
    %558 = vmatmul.f32.gmra.mxu0 %v41
    %v559 = vpop.f32.mrf.mxu0
    %v560 = vadd.f32 %v178, %v559
    %561 = vmatmul.f32.gmra.mxu0 %v43
    %v562 = vpop.f32.mrf.mxu0
    %v563 = vadd.f32 %v178, %v562
    %564 = vmatmul.f32.gmra.mxu0 %v45
    %v565 = vpop.f32.mrf.mxu0
    %v566 = vadd.f32 %v178, %v565
    %567 = vmatmul.f32.gmra.mxu0 %v47
    %v568 = vpop.f32.mrf.mxu0
    %v569 = vadd.f32 %v178, %v568
    %570 = vmatmul.f32.gmra.mxu0 %v49
    %v571 = vpop.f32.mrf.mxu0
    %v572 = vadd.f32 %v178, %v571
    %573 = vmatmul.f32.gmra.mxu0 %v51
    %v574 = vpop.f32.mrf.mxu0
    %v575 = vadd.f32 %v178, %v574
    %576 = vmatmul.f32.gmra.mxu0 %v53
    %v577 = vpop.f32.mrf.mxu0
    %v578 = vadd.f32 %v178, %v577
    %579 = vmatmul.f32.gmra.mxu0 %v55
    %v580 = vpop.f32.mrf.mxu0
    %v581 = vadd.f32 %v178, %v580
    %582 = vmatmul.f32.gmra.mxu0 %v57
    %v583 = vpop.f32.mrf.mxu0
    %v584 = vadd.f32 %v178, %v583
    %585 = vmatmul.f32.gmra.mxu0 %v59
    %v586 = vpop.f32.mrf.mxu0
    %v587 = vadd.f32 %v178, %v586
    %588 = vmatmul.f32.gmra.mxu0 %v61
    %v589 = vpop.f32.mrf.mxu0
    %v590 = vadd.f32 %v178, %v589
    %591 = vmatmul.f32.gmra.mxu0 %v63
    %v592 = vpop.f32.mrf.mxu0
    %v593 = vadd.f32 %v178, %v592
    %594 = vmatmul.f32.gmra.mxu0 %v65
    %v595 = vpop.f32.mrf.mxu0
    %v596 = vadd.f32 %v178, %v595
    %597 = vmatmul.f32.gmra.mxu0 %v67
    %v598 = vpop.f32.mrf.mxu0
    %v599 = vadd.f32 %v178, %v598
    %600 = vmatmul.f32.gmra.mxu0 %v69
    %v601 = vpop.f32.mrf.mxu0
    %v602 = vadd.f32 %v178, %v601
    %603 = vmatmul.f32.gmra.mxu0 %v71
    %v604 = vpop.f32.mrf.mxu0
    %v605 = vadd.f32 %v178, %v604
    %606 = vmatmul.f32.gmra.mxu0 %v73
    %v607 = vpop.f32.mrf.mxu0
    %v608 = vadd.f32 %v178, %v607
    %609 = vmatmul.f32.gmra.mxu0 %v75
    %v610 = vpop.f32.mrf.mxu0
    %v611 = vadd.f32 %v178, %v610
    %612 = vmatmul.f32.gmra.mxu0 %v77
    %v613 = vpop.f32.mrf.mxu0
    %v614 = vadd.f32 %v178, %v613
    %615 = vmatmul.f32.gmra.mxu0 %v79
    %v616 = vpop.f32.mrf.mxu0
    %v617 = vadd.f32 %v178, %v616
    %618 = vmatmul.f32.gmra.mxu0 %v81
    %v619 = vpop.f32.mrf.mxu0
    %v620 = vadd.f32 %v178, %v619
    %621 = vmatmul.f32.gmra.mxu0 %v83
    %v622 = vpop.f32.mrf.mxu0
    %v623 = vadd.f32 %v178, %v622
    %624 = vmatmul.f32.gmra.mxu0 %v85
    %v625 = vpop.f32.mrf.mxu0
    %v626 = vadd.f32 %v178, %v625
    %627 = vmatmul.f32.gmra.mxu0 %v87
    %v628 = vpop.f32.mrf.mxu0
    %v629 = vadd.f32 %v178, %v628
    %630 = vmatmul.f32.gmra.mxu0 %v89
    %v631 = vpop.f32.mrf.mxu0
    %v632 = vadd.f32 %v178, %v631
    %633 = vmatmul.f32.gmra.mxu0 %v91
    %v634 = vpop.f32.mrf.mxu0
    %v635 = vadd.f32 %v178, %v634
    %636 = vmatmul.f32.gmra.mxu0 %v93
    %v637 = vpop.f32.mrf.mxu0
    %v638 = vadd.f32 %v178, %v637
    %639 = vmatmul.f32.gmra.mxu0 %v95
    %v640 = vpop.f32.mrf.mxu0
    %v641 = vadd.f32 %v178, %v640
    %642 = vmatmul.f32.gmra.mxu0 %v97
    %v643 = vpop.f32.mrf.mxu0
    %v644 = vadd.f32 %v178, %v643
    %645 = vmatmul.f32.gmra.mxu0 %v99
    %v646 = vpop.f32.mrf.mxu0
    %v647 = vadd.f32 %v178, %v646
    %648 = vmatmul.f32.gmra.mxu0 %v101
    %v649 = vpop.f32.mrf.mxu0
    %v650 = vadd.f32 %v178, %v649
    %651 = vmatmul.f32.gmra.mxu0 %v103
    %v652 = vpop.f32.mrf.mxu0
    %v653 = vadd.f32 %v178, %v652
    %654 = vmatmul.f32.gmra.mxu0 %v105
    %v655 = vpop.f32.mrf.mxu0
    %v656 = vadd.f32 %v178, %v655
    %657 = vmatmul.f32.gmra.mxu0 %v107
    %v658 = vpop.f32.mrf.mxu0
    %v659 = vadd.f32 %v178, %v658
    %660 = vmatmul.f32.gmra.mxu0 %v109
    %v661 = vpop.f32.mrf.mxu0
    %v662 = vadd.f32 %v178, %v661
    %663 = vdwg.mxu0
    %664 = vmatpush.msra.mxu0 %v174
    %665 = vmatpush.msra.mxu0 %v172
    %666 = vmatpush.msra.mxu0 %v170
    %667 = vmatpush.msra.mxu0 %v168
    %668 = vmatpush.msra.mxu0 %v166
    %669 = vmatpush.msra.mxu0 %v164
    %670 = vmatpush.msra.mxu0 %v162
    %671 = vmatpush.msra.mxu0 %v160
    %672 = vmatpush.msra.mxu0 %v158
    %673 = vmatpush.msra.mxu0 %v156
    %674 = vmatpush.msra.mxu0 %v154
    %675 = vmatpush.msra.mxu0 %v152
    %676 = vmatpush.msra.mxu0 %v150
    %677 = vmatpush.msra.mxu0 %v148
    %678 = vmatpush.msra.mxu0 %v146
    %679 = vmatpush.msra.mxu0 %v144
    %680 = vmatmul.f32.gmra.mxu0 %v16
    %v681 = vpop.f32.mrf.mxu0
    %v682 = vadd.f32 %v521, %v681
    %683 = vmatmul.f32.gmra.mxu0 %v18
    %v684 = vpop.f32.mrf.mxu0
    %v685 = vadd.f32 %v524, %v684
    %686 = vmatmul.f32.gmra.mxu0 %v20
    %v687 = vpop.f32.mrf.mxu0
    %v688 = vadd.f32 %v527, %v687
    %689 = vmatmul.f32.gmra.mxu0 %v22
    %v690 = vpop.f32.mrf.mxu0
    %v691 = vadd.f32 %v530, %v690
    %692 = vmatmul.f32.gmra.mxu0 %v24
    %v693 = vpop.f32.mrf.mxu0
    %v694 = vadd.f32 %v533, %v693
    %695 = vmatmul.f32.gmra.mxu0 %v26
    %v696 = vpop.f32.mrf.mxu0
    %v697 = vadd.f32 %v536, %v696
    %698 = vmatmul.f32.gmra.mxu0 %v28
    %v699 = vpop.f32.mrf.mxu0
    %v700 = vadd.f32 %v539, %v699
    %701 = vmatmul.f32.gmra.mxu0 %v30
    %v702 = vpop.f32.mrf.mxu0
    %v703 = vadd.f32 %v542, %v702
    %704 = vmatmul.f32.gmra.mxu0 %v32
    %v705 = vpop.f32.mrf.mxu0
    %v706 = vadd.f32 %v545, %v705
    %707 = vmatmul.f32.gmra.mxu0 %v34
    %v708 = vpop.f32.mrf.mxu0
    %v709 = vadd.f32 %v548, %v708
    %710 = vmatmul.f32.gmra.mxu0 %v36
    %v711 = vpop.f32.mrf.mxu0
    %v712 = vadd.f32 %v551, %v711
    %713 = vmatmul.f32.gmra.mxu0 %v38
    %v714 = vpop.f32.mrf.mxu0
    %v715 = vadd.f32 %v554, %v714
    %716 = vmatmul.f32.gmra.mxu0 %v40
    %v717 = vpop.f32.mrf.mxu0
    %v718 = vadd.f32 %v557, %v717
    %719 = vmatmul.f32.gmra.mxu0 %v42
    %v720 = vpop.f32.mrf.mxu0
    %v721 = vadd.f32 %v560, %v720
    %722 = vmatmul.f32.gmra.mxu0 %v44
    %v723 = vpop.f32.mrf.mxu0
    %v724 = vadd.f32 %v563, %v723
    %725 = vmatmul.f32.gmra.mxu0 %v46
    %v726 = vpop.f32.mrf.mxu0
    %v727 = vadd.f32 %v566, %v726
    %728 = vmatmul.f32.gmra.mxu0 %v48
    %v729 = vpop.f32.mrf.mxu0
    %v730 = vadd.f32 %v569, %v729
    %731 = vmatmul.f32.gmra.mxu0 %v50
    %v732 = vpop.f32.mrf.mxu0
    %v733 = vadd.f32 %v572, %v732
    %734 = vmatmul.f32.gmra.mxu0 %v52
    %v735 = vpop.f32.mrf.mxu0
    %v736 = vadd.f32 %v575, %v735
    %737 = vmatmul.f32.gmra.mxu0 %v54
    %v738 = vpop.f32.mrf.mxu0
    %v739 = vadd.f32 %v578, %v738
    %740 = vmatmul.f32.gmra.mxu0 %v56
    %v741 = vpop.f32.mrf.mxu0
    %v742 = vadd.f32 %v581, %v741
    %743 = vmatmul.f32.gmra.mxu0 %v58
    %v744 = vpop.f32.mrf.mxu0
    %v745 = vadd.f32 %v584, %v744
    %746 = vmatmul.f32.gmra.mxu0 %v60
    %v747 = vpop.f32.mrf.mxu0
    %v748 = vadd.f32 %v587, %v747
    %749 = vmatmul.f32.gmra.mxu0 %v62
    %v750 = vpop.f32.mrf.mxu0
    %v751 = vadd.f32 %v590, %v750
    %752 = vmatmul.f32.gmra.mxu0 %v64
    %v753 = vpop.f32.mrf.mxu0
    %v754 = vadd.f32 %v593, %v753
    %755 = vmatmul.f32.gmra.mxu0 %v66
    %v756 = vpop.f32.mrf.mxu0
    %v757 = vadd.f32 %v596, %v756
    %758 = vmatmul.f32.gmra.mxu0 %v68
    %v759 = vpop.f32.mrf.mxu0
    %v760 = vadd.f32 %v599, %v759
    %761 = vmatmul.f32.gmra.mxu0 %v70
    %v762 = vpop.f32.mrf.mxu0
    %v763 = vadd.f32 %v602, %v762
    %764 = vmatmul.f32.gmra.mxu0 %v72
    %v765 = vpop.f32.mrf.mxu0
    %v766 = vadd.f32 %v605, %v765
    %767 = vmatmul.f32.gmra.mxu0 %v74
    %v768 = vpop.f32.mrf.mxu0
    %v769 = vadd.f32 %v608, %v768
    %770 = vmatmul.f32.gmra.mxu0 %v76
    %v771 = vpop.f32.mrf.mxu0
    %v772 = vadd.f32 %v611, %v771
    %773 = vmatmul.f32.gmra.mxu0 %v78
    %v774 = vpop.f32.mrf.mxu0
    %v775 = vadd.f32 %v614, %v774
    %776 = vmatmul.f32.gmra.mxu0 %v80
    %v777 = vpop.f32.mrf.mxu0
    %v778 = vadd.f32 %v617, %v777
    %779 = vmatmul.f32.gmra.mxu0 %v82
    %v780 = vpop.f32.mrf.mxu0
    %v781 = vadd.f32 %v620, %v780
    %782 = vmatmul.f32.gmra.mxu0 %v84
    %v783 = vpop.f32.mrf.mxu0
    %v784 = vadd.f32 %v623, %v783
    %785 = vmatmul.f32.gmra.mxu0 %v86
    %v786 = vpop.f32.mrf.mxu0
    %v787 = vadd.f32 %v626, %v786
    %788 = vmatmul.f32.gmra.mxu0 %v88
    %v789 = vpop.f32.mrf.mxu0
    %v790 = vadd.f32 %v629, %v789
    %791 = vmatmul.f32.gmra.mxu0 %v90
    %v792 = vpop.f32.mrf.mxu0
    %v793 = vadd.f32 %v632, %v792
    %794 = vmatmul.f32.gmra.mxu0 %v92
    %v795 = vpop.f32.mrf.mxu0
    %v796 = vadd.f32 %v635, %v795
    %797 = vmatmul.f32.gmra.mxu0 %v94
    %v798 = vpop.f32.mrf.mxu0
    %v799 = vadd.f32 %v638, %v798
    %800 = vmatmul.f32.gmra.mxu0 %v96
    %v801 = vpop.f32.mrf.mxu0
    %v802 = vadd.f32 %v641, %v801
    %803 = vmatmul.f32.gmra.mxu0 %v98
    %v804 = vpop.f32.mrf.mxu0
    %v805 = vadd.f32 %v644, %v804
    %806 = vmatmul.f32.gmra.mxu0 %v100
    %v807 = vpop.f32.mrf.mxu0
    %v808 = vadd.f32 %v647, %v807
    %809 = vmatmul.f32.gmra.mxu0 %v102
    %v810 = vpop.f32.mrf.mxu0
    %v811 = vadd.f32 %v650, %v810
    %812 = vmatmul.f32.gmra.mxu0 %v104
    %v813 = vpop.f32.mrf.mxu0
    %v814 = vadd.f32 %v653, %v813
    %815 = vmatmul.f32.gmra.mxu0 %v106
    %v816 = vpop.f32.mrf.mxu0
    %v817 = vadd.f32 %v656, %v816
    %818 = vmatmul.f32.gmra.mxu0 %v108
    %v819 = vpop.f32.mrf.mxu0
    %v820 = vadd.f32 %v659, %v819
    %821 = vmatmul.f32.gmra.mxu0 %v110
    %v822 = vpop.f32.mrf.mxu0
    %v823 = vadd.f32 %v662, %v822
    %824 = vdwg.mxu0
    %825 = vst [vmem:[#allocation2] sm:$0xff] %v360
    %826 = vst [vmem:[#allocation2 + $0x8] sm:$0xff] %v682
    %827 = vst [vmem:[#allocation2 + $0x10] sm:$0xff] %v363
    %828 = vst [vmem:[#allocation2 + $0x18] sm:$0xff] %v685
    %829 = vst [vmem:[#allocation2 + $0x20] sm:$0xff] %v366
    %830 = vst [vmem:[#allocation2 + $0x28] sm:$0xff] %v688
    %831 = vst [vmem:[#allocation2 + $0x30] sm:$0xff] %v369
    %832 = vst [vmem:[#allocation2 + $0x38] sm:$0xff] %v691
    %833 = vst [vmem:[#allocation2 + $0x40] sm:$0xff] %v372
    %834 = vst [vmem:[#allocation2 + $0x48] sm:$0xff] %v694
    %835 = vst [vmem:[#allocation2 + $0x50] sm:$0xff] %v375
    %836 = vst [vmem:[#allocation2 + $0x58] sm:$0xff] %v697
    %837 = vst [vmem:[#allocation2 + $0x60] sm:$0xff] %v378
    %838 = vst [vmem:[#allocation2 + $0x68] sm:$0xff] %v700
    %839 = vst [vmem:[#allocation2 + $0x70] sm:$0xff] %v381
    %840 = vst [vmem:[#allocation2 + $0x78] sm:$0xff] %v703
    %841 = vst [vmem:[#allocation2 + $0x80] sm:$0xff] %v384
    %842 = vst [vmem:[#allocation2 + $0x88] sm:$0xff] %v706
    %843 = vst [vmem:[#allocation2 + $0x90] sm:$0xff] %v387
    %844 = vst [vmem:[#allocation2 + $0x98] sm:$0xff] %v709
    %845 = vst [vmem:[#allocation2 + $0xa0] sm:$0xff] %v390
    %846 = vst [vmem:[#allocation2 + $0xa8] sm:$0xff] %v712
    %847 = vst [vmem:[#allocation2 + $0xb0] sm:$0xff] %v393
    %848 = vst [vmem:[#allocation2 + $0xb8] sm:$0xff] %v715
    %849 = vst [vmem:[#allocation2 + $0xc0] sm:$0xff] %v396
    %850 = vst [vmem:[#allocation2 + $0xc8] sm:$0xff] %v718
    %851 = vst [vmem:[#allocation2 + $0xd0] sm:$0xff] %v399
    %852 = vst [vmem:[#allocation2 + $0xd8] sm:$0xff] %v721
    %853 = vst [vmem:[#allocation2 + $0xe0] sm:$0xff] %v402
    %854 = vst [vmem:[#allocation2 + $0xe8] sm:$0xff] %v724
    %855 = vst [vmem:[#allocation2 + $0xf0] sm:$0xff] %v405
    %856 = vst [vmem:[#allocation2 + $0xf8] sm:$0xff] %v727
    %857 = vst [vmem:[#allocation2 + $0x100] sm:$0xff] %v408
    %858 = vst [vmem:[#allocation2 + $0x108] sm:$0xff] %v730
    %859 = vst [vmem:[#allocation2 + $0x110] sm:$0xff] %v411
    %860 = vst [vmem:[#allocation2 + $0x118] sm:$0xff] %v733
    %861 = vst [vmem:[#allocation2 + $0x120] sm:$0xff] %v414
    %862 = vst [vmem:[#allocation2 + $0x128] sm:$0xff] %v736
    %863 = vst [vmem:[#allocation2 + $0x130] sm:$0xff] %v417
    %864 = vst [vmem:[#allocation2 + $0x138] sm:$0xff] %v739
    %865 = vst [vmem:[#allocation2 + $0x140] sm:$0xff] %v420
    %866 = vst [vmem:[#allocation2 + $0x148] sm:$0xff] %v742
    %867 = vst [vmem:[#allocation2 + $0x150] sm:$0xff] %v423
    %868 = vst [vmem:[#allocation2 + $0x158] sm:$0xff] %v745
    %869 = vst [vmem:[#allocation2 + $0x160] sm:$0xff] %v426
    %870 = vst [vmem:[#allocation2 + $0x168] sm:$0xff] %v748
    %871 = vst [vmem:[#allocation2 + $0x170] sm:$0xff] %v429
    %872 = vst [vmem:[#allocation2 + $0x178] sm:$0xff] %v751
    %873 = vst [vmem:[#allocation2 + $0x180] sm:$0xff] %v432
    %874 = vst [vmem:[#allocation2 + $0x188] sm:$0xff] %v754
    %875 = vst [vmem:[#allocation2 + $0x190] sm:$0xff] %v435
    %876 = vst [vmem:[#allocation2 + $0x198] sm:$0xff] %v757
    %877 = vst [vmem:[#allocation2 + $0x1a0] sm:$0xff] %v438
    %878 = vst [vmem:[#allocation2 + $0x1a8] sm:$0xff] %v760
    %879 = vst [vmem:[#allocation2 + $0x1b0] sm:$0xff] %v441
    %880 = vst [vmem:[#allocation2 + $0x1b8] sm:$0xff] %v763
    %881 = vst [vmem:[#allocation2 + $0x1c0] sm:$0xff] %v444
    %882 = vst [vmem:[#allocation2 + $0x1c8] sm:$0xff] %v766
    %883 = vst [vmem:[#allocation2 + $0x1d0] sm:$0xff] %v447
    %884 = vst [vmem:[#allocation2 + $0x1d8] sm:$0xff] %v769
    %885 = vst [vmem:[#allocation2 + $0x1e0] sm:$0xff] %v450
    %886 = vst [vmem:[#allocation2 + $0x1e8] sm:$0xff] %v772
    %887 = vst [vmem:[#allocation2 + $0x1f0] sm:$0xff] %v453
    %888 = vst [vmem:[#allocation2 + $0x1f8] sm:$0xff] %v775
    %889 = vst [vmem:[#allocation2 + $0x200] sm:$0xff] %v456
    %890 = vst [vmem:[#allocation2 + $0x208] sm:$0xff] %v778
    %891 = vst [vmem:[#allocation2 + $0x210] sm:$0xff] %v459
    %892 = vst [vmem:[#allocation2 + $0x218] sm:$0xff] %v781
    %893 = vst [vmem:[#allocation2 + $0x220] sm:$0xff] %v462
    %894 = vst [vmem:[#allocation2 + $0x228] sm:$0xff] %v784
    %895 = vst [vmem:[#allocation2 + $0x230] sm:$0xff] %v465
    %896 = vst [vmem:[#allocation2 + $0x238] sm:$0xff] %v787
    %897 = vst [vmem:[#allocation2 + $0x240] sm:$0xff] %v468
    %898 = vst [vmem:[#allocation2 + $0x248] sm:$0xff] %v790
    %899 = vst [vmem:[#allocation2 + $0x250] sm:$0xff] %v471
    %900 = vst [vmem:[#allocation2 + $0x258] sm:$0xff] %v793
    %901 = vst [vmem:[#allocation2 + $0x260] sm:$0xff] %v474
    %902 = vst [vmem:[#allocation2 + $0x268] sm:$0xff] %v796
    %903 = vst [vmem:[#allocation2 + $0x270] sm:$0xff] %v477
    %904 = vst [vmem:[#allocation2 + $0x278] sm:$0xff] %v799
    %905 = vst [vmem:[#allocation2 + $0x280] sm:$0xff] %v480
    %906 = vst [vmem:[#allocation2 + $0x288] sm:$0xff] %v802
    %907 = vst [vmem:[#allocation2 + $0x290] sm:$0xff] %v483
    %908 = vst [vmem:[#allocation2 + $0x298] sm:$0xff] %v805
    %909 = vst [vmem:[#allocation2 + $0x2a0] sm:$0xff] %v486
    %910 = vst [vmem:[#allocation2 + $0x2a8] sm:$0xff] %v808
    %911 = vst [vmem:[#allocation2 + $0x2b0] sm:$0xff] %v489
    %912 = vst [vmem:[#allocation2 + $0x2b8] sm:$0xff] %v811
    %913 = vst [vmem:[#allocation2 + $0x2c0] sm:$0xff] %v492
    %914 = vst [vmem:[#allocation2 + $0x2c8] sm:$0xff] %v814
    %915 = vst [vmem:[#allocation2 + $0x2d0] sm:$0xff] %v495
    %916 = vst [vmem:[#allocation2 + $0x2d8] sm:$0xff] %v817
    %917 = vst [vmem:[#allocation2 + $0x2e0] sm:$0xff] %v498
    %918 = vst [vmem:[#allocation2 + $0x2e8] sm:$0xff] %v820
    %919 = vst [vmem:[#allocation2 + $0x2f0] sm:$0xff] %v501
    %920 = vst [vmem:[#allocation2 + $0x2f8] sm:$0xff] %v823
    // Predicated region
    $region14: #{forward.1} parent=1 // pred_check
      _
    $region15: #{forward.1} parent=1 // pred_check_branch
      %922 = sbr.rel (0) target = $region17
    $region16: #{forward.1} parent=1 // pred_region
      %924 = vsyncadd [#allocation3], 0
      %s925 = sshll.u32 [#allocation2], 4
      %s926 = int_to_ptr.vmem [resolvable:$true] %s925
      %s927 = sshll.u32 %s3, 4
      %s928 = int_to_ptr.hbm [resolvable:$true] %s927
      %933 = dma.vmem_to_hbm [thread:$0]  %s926, 12288, %s928, [#allocation3], 256, 256, 16
    $region17: #{forward.1} parent=1 // pred_fallthru
      _
    // Predicated region
    $region18: #{forward.1} parent=1 // pred_check
      _
    $region19: #{forward.1} parent=1 // pred_check_branch
      %935 = sbr.rel (0) target = $region21
    $region20: #{forward.1} parent=1 // pred_region
      %937 = dma.done [#allocation3], 12288
    $region21: #{forward.1} parent=1 // pred_fallthru
      _
    %938 = vsyncpa [#allocation3], 1

</llo_original>
